<compile_context>
chip_gen: v7x
topology: tpu7x:2x2x1
jax: 0.10.0
libtpu: 0.0.40
codegen_flags: <defaults>
</compile_context>

<pallas_src>
import numpy as np
import jax
import jax.numpy as jnp
from jax.experimental import pallas as pl
from jax.experimental.pallas import tpu as pltpu

D_FEAT = 6
HIDDEN = 32
NUM_LAYERS = 2
OUTPUT_SIZE = 1
BATCH = 2
SEQ = 8
BATCH_PAD = 8           # pad batch to a full sublane group


def gru_kernel(x_ref,        # ((S+1)*Bp, D)   time-major, batch-padded, +1 zero step
               wih0p_ref,    # (D, 8H)         layer-0 input proj, column-permuted
               bpad_ref,     # (1, 8H)         all folded biases
               wf_ref,       # (2H, 8H)        fused per-step RHS
               fcwe_ref,     # (2H, OUT)       fc weight (h0 rows zeroed)
               fcb_ref,      # (1, OUT)
               out_ref):     # (Bp, OUT)
    H = HIDDEN
    BP = BATCH_PAD

    # Prologue: layer-0 input projection (+ every folded bias) for ALL
    # timesteps in a single MXU push.  Row-group t is the additive slab used
    # by recurrence iteration t-1 (and row-group 0 by the pipeline prologue).
    slab = (jnp.dot(x_ref[...], wih0p_ref[...],
                    preferred_element_type=jnp.float32)
            + bpad_ref[...])                                   # ((S+1)*BP, 8H)

    wf = wf_ref[...]

    # Mask that zeroes the h1-half of the state (h1 initial state is 0).
    col = jax.lax.broadcasted_iota(jnp.int32, (BP, 2 * H), 1)
    h0_mask = (col < H).astype(jnp.float32)

    # ---- pipeline prologue: h0(0) from slab[0] (h0(-1)=0 => no matmul) -----
    g = slab[0:BP, :]
    rz = jax.nn.sigmoid(g[:, :4 * H])                  # [r0, r1*, z0, z1*]
    r, z = rz[:, :2 * H], rz[:, 2 * H:]
    n = jnp.tanh(g[:, 4 * H:6 * H] + r * g[:, 6 * H:])
    s = ((1.0 - z) * n) * h0_mask                      # s = [h0(0) | 0]

    # ---- steady state: ONE fused MXU push per timestep (fully unrolled) ----
    # iteration t consumes slab[t+1] and produces s = [h0(t+1) | h1(t)]
    for t in range(SEQ):
        g = (jnp.dot(s, wf, preferred_element_type=jnp.float32)
             + slab[(t + 1) * BP:(t + 2) * BP, :])     # (BP, 8H)
        rz = jax.nn.sigmoid(g[:, :4 * H])              # full 128-lane tile
        r, z = rz[:, :2 * H], rz[:, 2 * H:]
        n = jnp.tanh(g[:, 4 * H:6 * H] + r * g[:, 6 * H:])
        s = n + z * (s - n)                            # (1-z)*n + z*s_prev

    # Epilogue: fc_out on h1(S-1); fcwe's h0 rows are zero so no slicing.
    out_ref[...] = (jnp.dot(s, fcwe_ref[...],
                            preferred_element_type=jnp.float32)
                    + fcb_ref[...])


def gru_model_forward(x, params):
    """x: (batch, seq, d_feat) float32 -> (batch, output_size) float32."""
    B, S, D = x.shape
    H = HIDDEN
    BP = BATCH_PAD

    (wih0, whh0, bih0, bhh0,
     wih1, whh1, bih1, bhh1,
     fcw, fcb) = params

    def gate(w, i):                     # rows of gate i (r=0, z=1, n=2)
        return w[i * H:(i + 1) * H, :]

    # -------- one-time parameter packing (pure XLA, outside the kernel) -----
    # fused output column layout (8H = 256 lanes, two full tiles):
    #   [ a0_r | a1_r | a0_z | a1_z | gin0 | gin1 | ghn0 | ghn1 ]
    # layer-0 input projection columns (multiplied by x(t)):
    wih0_pad = jnp.zeros((D, 8 * H), jnp.float32)
    wih0_pad = wih0_pad.at[:, 0:H].set(gate(wih0, 0).T)            # a0_r
    wih0_pad = wih0_pad.at[:, 2 * H:3 * H].set(gate(wih0, 1).T)    # a0_z
    wih0_pad = wih0_pad.at[:, 4 * H:5 * H].set(gate(wih0, 2).T)    # gin0

    # every per-step bias folded into the precomputed slab:
    bias_pad = jnp.concatenate([
        bih0[0:H] + bhh0[0:H],              # a0_r
        bih1[0:H] + bhh1[0:H],              # a1_r
        bih0[H:2 * H] + bhh0[H:2 * H],      # a0_z
        bih1[H:2 * H] + bhh1[H:2 * H],      # a1_z
        bih0[2 * H:],                       # gin0 (bih only)
        bih1[2 * H:],                       # gin1 (bih only)
        bhh0[2 * H:],                       # ghn0 (bhh only)
        bhh1[2 * H:],                       # ghn1 (bhh only)
    ]).reshape(1, 8 * H)

    # fused per-step RHS: rows 0..H-1 multiply h0(t), rows H..2H-1 multiply h1(t-1)
    wf = jnp.zeros((2 * H, 8 * H), jnp.float32)
    wf = wf.at[0:H, 0:H].set(gate(whh0, 0).T)              # gh0_r
    wf = wf.at[0:H, H:2 * H].set(gate(wih1, 0).T)          # gi1_r
    wf = wf.at[H:, H:2 * H].set(gate(whh1, 0).T)           # gh1_r
    wf = wf.at[0:H, 2 * H:3 * H].set(gate(whh0, 1).T)      # gh0_z
    wf = wf.at[0:H, 3 * H:4 * H].set(gate(wih1, 1).T)      # gi1_z
    wf = wf.at[H:, 3 * H:4 * H].set(gate(whh1, 1).T)       # gh1_z
    wf = wf.at[0:H, 5 * H:6 * H].set(gate(wih1, 2).T)      # gin1
    wf = wf.at[0:H, 6 * H:7 * H].set(gate(whh0, 2).T)      # ghn0
    wf = wf.at[H:, 7 * H:8 * H].set(gate(whh1, 2).T)       # ghn1

    fcw_ext = jnp.zeros((2 * H, OUTPUT_SIZE), jnp.float32)
    fcw_ext = fcw_ext.at[H:, :].set(fcw.T)                 # pick h1 half of s
    fcb2 = fcb.reshape(1, OUTPUT_SIZE)

    # time-major x, batch padded to 8 sublanes, plus one zero timestep so the
    # last recurrence iteration reads a valid (unused) layer-0 slab.
    x_tm = jnp.transpose(x, (1, 0, 2))                               # (S, B, D)
    x_pad = jnp.zeros((S + 1, BP, D), jnp.float32).at[:S, :B, :].set(x_tm)
    x_flat = x_pad.reshape((S + 1) * BP, D)

    inputs = (x_flat, wih0_pad, bias_pad, wf, fcw_ext, fcb2)

    def full(a):
        nd = a.ndim
        return pl.BlockSpec(a.shape, lambda i, _nd=nd: (0,) * _nd)

    out = pl.pallas_call(
        gru_kernel,
        out_shape=jax.ShapeDtypeStruct((BP, OUTPUT_SIZE), jnp.float32),
        grid_spec=pltpu.PrefetchScalarGridSpec(
            num_scalar_prefetch=0,
            grid=(1,),                                   # single invocation
            in_specs=[full(a) for a in inputs],
            out_specs=pl.BlockSpec((BP, OUTPUT_SIZE), lambda i: (0, 0)),
        ),
        compiler_params=pltpu.CompilerParams(
            dimension_semantics=("arbitrary",)),
    )(*inputs)
    return out[:B]


def init_params(key):
    """PyTorch-style uniform(-1/sqrt(H), 1/sqrt(H)) init, deterministic."""
    k = 1.0 / np.sqrt(HIDDEN)
    shapes = [
        (3 * HIDDEN, D_FEAT),   # weight_ih_l0
        (3 * HIDDEN, HIDDEN),   # weight_hh_l0
        (3 * HIDDEN,),          # bias_ih_l0
        (3 * HIDDEN,),          # bias_hh_l0
        (3 * HIDDEN, HIDDEN),   # weight_ih_l1
        (3 * HIDDEN, HIDDEN),   # weight_hh_l1
        (3 * HIDDEN,),          # bias_ih_l1
        (3 * HIDDEN,),          # bias_hh_l1
        (OUTPUT_SIZE, HIDDEN),  # fc_out.weight
        (OUTPUT_SIZE,),         # fc_out.bias
    ]
    keys = jax.random.split(key, len(shapes))
    return tuple(
        jax.random.uniform(kk, s, jnp.float32, minval=-k, maxval=k)
        for kk, s in zip(keys, shapes)
    )


def gru_model_ref(x, params):
    """Pure-JAX reference matching torch.nn.GRU + Linear semantics."""
    (wih0, whh0, bih0, bhh0, wih1, whh1, bih1, bhh1, fcw, fcb) = params
    wih = [wih0, wih1]
    whh = [whh0, whh1]
    bih = [bih0, bih1]
    bhh = [bhh0, bhh1]
    B, S, D = x.shape
    H = HIDDEN
    seq = x
    for l in range(NUM_LAYERS):
        h = jnp.zeros((B, H), jnp.float32)
        outs = []
        for t in range(S):
            xt = seq[:, t]
            gi = xt @ wih[l].T + bih[l]
            gh = h @ whh[l].T + bhh[l]
            r = jax.nn.sigmoid(gi[:, :H] + gh[:, :H])
            z = jax.nn.sigmoid(gi[:, H:2 * H] + gh[:, H:2 * H])
            n = jnp.tanh(gi[:, 2 * H:] + r * gh[:, 2 * H:])
            h = (1.0 - z) * n + z * h
            outs.append(h)
        seq = jnp.stack(outs, axis=1)
    return seq[:, -1] @ fcw.T + fcb


if __name__ == "__main__":
    key = jax.random.PRNGKey(0)
    k_x, k_p = jax.random.split(key)
    x = jax.random.normal(k_x, (BATCH, SEQ, D_FEAT), jnp.float32)
    params = init_params(k_p)

    out = gru_model_forward(x, params)
    out = jax.block_until_ready(out)

    ref = jax.block_until_ready(gru_model_ref(x, params))
    assert out.shape == (BATCH, OUTPUT_SIZE)
    np.testing.assert_allclose(np.asarray(out), np.asarray(ref),
                               rtol=2e-5, atol=2e-5)
    print("KERNEL_OK")
</pallas_src>

<mosaic_0001>
module attributes {stable_mosaic.version = 11 : i64} {
  func.func @gru_kernel(%arg0: i32, %arg1: memref<72x6xf32, #tpu.memory_space<vmem>>, %arg2: memref<6x256xf32, #tpu.memory_space<vmem>>, %arg3: memref<1x256xf32, #tpu.memory_space<vmem>>, %arg4: memref<64x256xf32, #tpu.memory_space<vmem>>, %arg5: memref<64x1xf32, #tpu.memory_space<vmem>>, %arg6: memref<1x1xf32, #tpu.memory_space<vmem>>, %arg7: memref<8x1xf32, #tpu.memory_space<vmem>>) attributes {dimension_semantics = [#tpu.dimension_semantics<arbitrary>], iteration_bounds = array<i64: 1>, scalar_prefetch = 0 : i64, scratch_operands = 0 : i64, tpu.core_type = #tpu.core_type<tc>, window_params = [{pipeline_mode = #tpu.pipeline_mode<synchronous>, transform_indices = @transform_0, window_bounds = array<i64: 72, 6>}, {pipeline_mode = #tpu.pipeline_mode<synchronous>, transform_indices = @transform_1, window_bounds = array<i64: 6, 256>}, {pipeline_mode = #tpu.pipeline_mode<synchronous>, transform_indices = @transform_2, window_bounds = array<i64: 1, 256>}, {pipeline_mode = #tpu.pipeline_mode<synchronous>, transform_indices = @transform_3, window_bounds = array<i64: 64, 256>}, {pipeline_mode = #tpu.pipeline_mode<synchronous>, transform_indices = @transform_4, window_bounds = array<i64: 64, 1>}, {pipeline_mode = #tpu.pipeline_mode<synchronous>, transform_indices = @transform_5, window_bounds = array<i64: 1, 1>}, {pipeline_mode = #tpu.pipeline_mode<synchronous>, transform_indices = @transform_6, window_bounds = array<i64: 8, 1>}]} {
    %c0 = arith.constant 0 : index
    %c0_0 = arith.constant 0 : index
    %0 = vector.load %arg1[%c0, %c0_0] : memref<72x6xf32, #tpu.memory_space<vmem>>, vector<72x6xf32>
    %c0_1 = arith.constant 0 : index
    %c0_2 = arith.constant 0 : index
    %1 = vector.load %arg2[%c0_1, %c0_2] : memref<6x256xf32, #tpu.memory_space<vmem>>, vector<6x256xf32>
    %cst = arith.constant dense<0.000000e+00> : vector<72x256xf32>
    %2 = tpu.matmul %0, %1, %cst {dimension_numbers = #tpu.dot_dimension_numbers<[1], [0], [0], [1], [0, 0, 1, 1], [], []>} : vector<72x6xf32>, vector<6x256xf32>, vector<72x256xf32> -> vector<72x256xf32>
    %c0_3 = arith.constant 0 : index
    %c0_4 = arith.constant 0 : index
    %3 = vector.load %arg3[%c0_3, %c0_4] : memref<1x256xf32, #tpu.memory_space<vmem>>, vector<1x256xf32>
    %4 = vector.broadcast %3 : vector<1x256xf32> to vector<72x256xf32>
    %5 = arith.addf %2, %4 : vector<72x256xf32>
    %c0_5 = arith.constant 0 : index
    %c0_6 = arith.constant 0 : index
    %6 = vector.load %arg4[%c0_5, %c0_6] : memref<64x256xf32, #tpu.memory_space<vmem>>, vector<64x256xf32>
    %7 = tpu.iota {dimensions = array<i32: 1>} : vector<8x64xi32>
    %c32_i32 = arith.constant 32 : i32
    %8 = vector.broadcast %c32_i32 : i32 to vector<8x64xi32>
    %9 = arith.cmpi slt, %7, %8 : vector<8x64xi32>
    %10 = arith.extui %9 : vector<8x64xi1> to vector<8x64xi32>
    %11 = arith.sitofp %10 : vector<8x64xi32> to vector<8x64xf32>
    %12 = vector.extract_strided_slice %5 {offsets = [0, 0], sizes = [8, 256], strides = [1, 1]} : vector<72x256xf32> to vector<8x256xf32>
    %13 = vector.extract_strided_slice %12 {offsets = [0, 0], sizes = [8, 128], strides = [1, 1]} : vector<8x256xf32> to vector<8x128xf32>
    %14 = arith.negf %13 : vector<8x128xf32>
    %15 = math.exp %14 : vector<8x128xf32>
    %cst_7 = arith.constant 1.000000e+00 : f32
    %16 = vector.broadcast %cst_7 : f32 to vector<8x128xf32>
    %17 = arith.addf %16, %15 : vector<8x128xf32>
    %18 = arith.divf %16, %17 : vector<8x128xf32>
    %19 = vector.extract_strided_slice %18 {offsets = [0, 0], sizes = [8, 64], strides = [1, 1]} : vector<8x128xf32> to vector<8x64xf32>
    %20 = vector.extract_strided_slice %18 {offsets = [0, 64], sizes = [8, 64], strides = [1, 1]} : vector<8x128xf32> to vector<8x64xf32>
    %21 = vector.extract_strided_slice %12 {offsets = [0, 128], sizes = [8, 64], strides = [1, 1]} : vector<8x256xf32> to vector<8x64xf32>
    %22 = vector.extract_strided_slice %12 {offsets = [0, 192], sizes = [8, 64], strides = [1, 1]} : vector<8x256xf32> to vector<8x64xf32>
    %23 = arith.mulf %19, %22 : vector<8x64xf32>
    %24 = arith.addf %21, %23 : vector<8x64xf32>
    %25 = math.tanh %24 : vector<8x64xf32>
    %cst_8 = arith.constant 1.000000e+00 : f32
    %26 = vector.broadcast %cst_8 : f32 to vector<8x64xf32>
    %27 = arith.subf %26, %20 : vector<8x64xf32>
    %28 = arith.mulf %27, %25 : vector<8x64xf32>
    %29 = arith.mulf %28, %11 : vector<8x64xf32>
    %cst_9 = arith.constant dense<0.000000e+00> : vector<8x256xf32>
    %30 = tpu.matmul %29, %6, %cst_9 {dimension_numbers = #tpu.dot_dimension_numbers<[1], [0], [0], [1], [0, 0, 1, 1], [], []>} : vector<8x64xf32>, vector<64x256xf32>, vector<8x256xf32> -> vector<8x256xf32>
    %31 = vector.extract_strided_slice %5 {offsets = [8, 0], sizes = [8, 256], strides = [1, 1]} : vector<72x256xf32> to vector<8x256xf32>
    %32 = arith.addf %30, %31 : vector<8x256xf32>
    %33 = vector.extract_strided_slice %32 {offsets = [0, 0], sizes = [8, 128], strides = [1, 1]} : vector<8x256xf32> to vector<8x128xf32>
    %34 = arith.negf %33 : vector<8x128xf32>
    %35 = math.exp %34 : vector<8x128xf32>
    %cst_10 = arith.constant 1.000000e+00 : f32
    %36 = vector.broadcast %cst_10 : f32 to vector<8x128xf32>
    %37 = arith.addf %36, %35 : vector<8x128xf32>
    %38 = arith.divf %36, %37 : vector<8x128xf32>
    %39 = vector.extract_strided_slice %38 {offsets = [0, 0], sizes = [8, 64], strides = [1, 1]} : vector<8x128xf32> to vector<8x64xf32>
    %40 = vector.extract_strided_slice %38 {offsets = [0, 64], sizes = [8, 64], strides = [1, 1]} : vector<8x128xf32> to vector<8x64xf32>
    %41 = vector.extract_strided_slice %32 {offsets = [0, 128], sizes = [8, 64], strides = [1, 1]} : vector<8x256xf32> to vector<8x64xf32>
    %42 = vector.extract_strided_slice %32 {offsets = [0, 192], sizes = [8, 64], strides = [1, 1]} : vector<8x256xf32> to vector<8x64xf32>
    %43 = arith.mulf %39, %42 : vector<8x64xf32>
    %44 = arith.addf %41, %43 : vector<8x64xf32>
    %45 = math.tanh %44 : vector<8x64xf32>
    %46 = arith.subf %29, %45 : vector<8x64xf32>
    %47 = arith.mulf %40, %46 : vector<8x64xf32>
    %48 = arith.addf %45, %47 : vector<8x64xf32>
    %cst_11 = arith.constant dense<0.000000e+00> : vector<8x256xf32>
    %49 = tpu.matmul %48, %6, %cst_11 {dimension_numbers = #tpu.dot_dimension_numbers<[1], [0], [0], [1], [0, 0, 1, 1], [], []>} : vector<8x64xf32>, vector<64x256xf32>, vector<8x256xf32> -> vector<8x256xf32>
    %50 = vector.extract_strided_slice %5 {offsets = [16, 0], sizes = [8, 256], strides = [1, 1]} : vector<72x256xf32> to vector<8x256xf32>
    %51 = arith.addf %49, %50 : vector<8x256xf32>
    %52 = vector.extract_strided_slice %51 {offsets = [0, 0], sizes = [8, 128], strides = [1, 1]} : vector<8x256xf32> to vector<8x128xf32>
    %53 = arith.negf %52 : vector<8x128xf32>
    %54 = math.exp %53 : vector<8x128xf32>
    %cst_12 = arith.constant 1.000000e+00 : f32
    %55 = vector.broadcast %cst_12 : f32 to vector<8x128xf32>
    %56 = arith.addf %55, %54 : vector<8x128xf32>
    %57 = arith.divf %55, %56 : vector<8x128xf32>
    %58 = vector.extract_strided_slice %57 {offsets = [0, 0], sizes = [8, 64], strides = [1, 1]} : vector<8x128xf32> to vector<8x64xf32>
    %59 = vector.extract_strided_slice %57 {offsets = [0, 64], sizes = [8, 64], strides = [1, 1]} : vector<8x128xf32> to vector<8x64xf32>
    %60 = vector.extract_strided_slice %51 {offsets = [0, 128], sizes = [8, 64], strides = [1, 1]} : vector<8x256xf32> to vector<8x64xf32>
    %61 = vector.extract_strided_slice %51 {offsets = [0, 192], sizes = [8, 64], strides = [1, 1]} : vector<8x256xf32> to vector<8x64xf32>
    %62 = arith.mulf %58, %61 : vector<8x64xf32>
    %63 = arith.addf %60, %62 : vector<8x64xf32>
    %64 = math.tanh %63 : vector<8x64xf32>
    %65 = arith.subf %48, %64 : vector<8x64xf32>
    %66 = arith.mulf %59, %65 : vector<8x64xf32>
    %67 = arith.addf %64, %66 : vector<8x64xf32>
    %cst_13 = arith.constant dense<0.000000e+00> : vector<8x256xf32>
    %68 = tpu.matmul %67, %6, %cst_13 {dimension_numbers = #tpu.dot_dimension_numbers<[1], [0], [0], [1], [0, 0, 1, 1], [], []>} : vector<8x64xf32>, vector<64x256xf32>, vector<8x256xf32> -> vector<8x256xf32>
    %69 = vector.extract_strided_slice %5 {offsets = [24, 0], sizes = [8, 256], strides = [1, 1]} : vector<72x256xf32> to vector<8x256xf32>
    %70 = arith.addf %68, %69 : vector<8x256xf32>
    %71 = vector.extract_strided_slice %70 {offsets = [0, 0], sizes = [8, 128], strides = [1, 1]} : vector<8x256xf32> to vector<8x128xf32>
    %72 = arith.negf %71 : vector<8x128xf32>
    %73 = math.exp %72 : vector<8x128xf32>
    %cst_14 = arith.constant 1.000000e+00 : f32
    %74 = vector.broadcast %cst_14 : f32 to vector<8x128xf32>
    %75 = arith.addf %74, %73 : vector<8x128xf32>
    %76 = arith.divf %74, %75 : vector<8x128xf32>
    %77 = vector.extract_strided_slice %76 {offsets = [0, 0], sizes = [8, 64], strides = [1, 1]} : vector<8x128xf32> to vector<8x64xf32>
    %78 = vector.extract_strided_slice %76 {offsets = [0, 64], sizes = [8, 64], strides = [1, 1]} : vector<8x128xf32> to vector<8x64xf32>
    %79 = vector.extract_strided_slice %70 {offsets = [0, 128], sizes = [8, 64], strides = [1, 1]} : vector<8x256xf32> to vector<8x64xf32>
    %80 = vector.extract_strided_slice %70 {offsets = [0, 192], sizes = [8, 64], strides = [1, 1]} : vector<8x256xf32> to vector<8x64xf32>
    %81 = arith.mulf %77, %80 : vector<8x64xf32>
    %82 = arith.addf %79, %81 : vector<8x64xf32>
    %83 = math.tanh %82 : vector<8x64xf32>
    %84 = arith.subf %67, %83 : vector<8x64xf32>
    %85 = arith.mulf %78, %84 : vector<8x64xf32>
    %86 = arith.addf %83, %85 : vector<8x64xf32>
    %cst_15 = arith.constant dense<0.000000e+00> : vector<8x256xf32>
    %87 = tpu.matmul %86, %6, %cst_15 {dimension_numbers = #tpu.dot_dimension_numbers<[1], [0], [0], [1], [0, 0, 1, 1], [], []>} : vector<8x64xf32>, vector<64x256xf32>, vector<8x256xf32> -> vector<8x256xf32>
    %88 = vector.extract_strided_slice %5 {offsets = [32, 0], sizes = [8, 256], strides = [1, 1]} : vector<72x256xf32> to vector<8x256xf32>
    %89 = arith.addf %87, %88 : vector<8x256xf32>
    %90 = vector.extract_strided_slice %89 {offsets = [0, 0], sizes = [8, 128], strides = [1, 1]} : vector<8x256xf32> to vector<8x128xf32>
    %91 = arith.negf %90 : vector<8x128xf32>
    %92 = math.exp %91 : vector<8x128xf32>
    %cst_16 = arith.constant 1.000000e+00 : f32
    %93 = vector.broadcast %cst_16 : f32 to vector<8x128xf32>
    %94 = arith.addf %93, %92 : vector<8x128xf32>
    %95 = arith.divf %93, %94 : vector<8x128xf32>
    %96 = vector.extract_strided_slice %95 {offsets = [0, 0], sizes = [8, 64], strides = [1, 1]} : vector<8x128xf32> to vector<8x64xf32>
    %97 = vector.extract_strided_slice %95 {offsets = [0, 64], sizes = [8, 64], strides = [1, 1]} : vector<8x128xf32> to vector<8x64xf32>
    %98 = vector.extract_strided_slice %89 {offsets = [0, 128], sizes = [8, 64], strides = [1, 1]} : vector<8x256xf32> to vector<8x64xf32>
    %99 = vector.extract_strided_slice %89 {offsets = [0, 192], sizes = [8, 64], strides = [1, 1]} : vector<8x256xf32> to vector<8x64xf32>
    %100 = arith.mulf %96, %99 : vector<8x64xf32>
    %101 = arith.addf %98, %100 : vector<8x64xf32>
    %102 = math.tanh %101 : vector<8x64xf32>
    %103 = arith.subf %86, %102 : vector<8x64xf32>
    %104 = arith.mulf %97, %103 : vector<8x64xf32>
    %105 = arith.addf %102, %104 : vector<8x64xf32>
    %cst_17 = arith.constant dense<0.000000e+00> : vector<8x256xf32>
    %106 = tpu.matmul %105, %6, %cst_17 {dimension_numbers = #tpu.dot_dimension_numbers<[1], [0], [0], [1], [0, 0, 1, 1], [], []>} : vector<8x64xf32>, vector<64x256xf32>, vector<8x256xf32> -> vector<8x256xf32>
    %107 = vector.extract_strided_slice %5 {offsets = [40, 0], sizes = [8, 256], strides = [1, 1]} : vector<72x256xf32> to vector<8x256xf32>
    %108 = arith.addf %106, %107 : vector<8x256xf32>
    %109 = vector.extract_strided_slice %108 {offsets = [0, 0], sizes = [8, 128], strides = [1, 1]} : vector<8x256xf32> to vector<8x128xf32>
    %110 = arith.negf %109 : vector<8x128xf32>
    %111 = math.exp %110 : vector<8x128xf32>
    %cst_18 = arith.constant 1.000000e+00 : f32
    %112 = vector.broadcast %cst_18 : f32 to vector<8x128xf32>
    %113 = arith.addf %112, %111 : vector<8x128xf32>
    %114 = arith.divf %112, %113 : vector<8x128xf32>
    %115 = vector.extract_strided_slice %114 {offsets = [0, 0], sizes = [8, 64], strides = [1, 1]} : vector<8x128xf32> to vector<8x64xf32>
    %116 = vector.extract_strided_slice %114 {offsets = [0, 64], sizes = [8, 64], strides = [1, 1]} : vector<8x128xf32> to vector<8x64xf32>
    %117 = vector.extract_strided_slice %108 {offsets = [0, 128], sizes = [8, 64], strides = [1, 1]} : vector<8x256xf32> to vector<8x64xf32>
    %118 = vector.extract_strided_slice %108 {offsets = [0, 192], sizes = [8, 64], strides = [1, 1]} : vector<8x256xf32> to vector<8x64xf32>
    %119 = arith.mulf %115, %118 : vector<8x64xf32>
    %120 = arith.addf %117, %119 : vector<8x64xf32>
    %121 = math.tanh %120 : vector<8x64xf32>
    %122 = arith.subf %105, %121 : vector<8x64xf32>
    %123 = arith.mulf %116, %122 : vector<8x64xf32>
    %124 = arith.addf %121, %123 : vector<8x64xf32>
    %cst_19 = arith.constant dense<0.000000e+00> : vector<8x256xf32>
    %125 = tpu.matmul %124, %6, %cst_19 {dimension_numbers = #tpu.dot_dimension_numbers<[1], [0], [0], [1], [0, 0, 1, 1], [], []>} : vector<8x64xf32>, vector<64x256xf32>, vector<8x256xf32> -> vector<8x256xf32>
    %126 = vector.extract_strided_slice %5 {offsets = [48, 0], sizes = [8, 256], strides = [1, 1]} : vector<72x256xf32> to vector<8x256xf32>
    %127 = arith.addf %125, %126 : vector<8x256xf32>
    %128 = vector.extract_strided_slice %127 {offsets = [0, 0], sizes = [8, 128], strides = [1, 1]} : vector<8x256xf32> to vector<8x128xf32>
    %129 = arith.negf %128 : vector<8x128xf32>
    %130 = math.exp %129 : vector<8x128xf32>
    %cst_20 = arith.constant 1.000000e+00 : f32
    %131 = vector.broadcast %cst_20 : f32 to vector<8x128xf32>
    %132 = arith.addf %131, %130 : vector<8x128xf32>
    %133 = arith.divf %131, %132 : vector<8x128xf32>
    %134 = vector.extract_strided_slice %133 {offsets = [0, 0], sizes = [8, 64], strides = [1, 1]} : vector<8x128xf32> to vector<8x64xf32>
    %135 = vector.extract_strided_slice %133 {offsets = [0, 64], sizes = [8, 64], strides = [1, 1]} : vector<8x128xf32> to vector<8x64xf32>
    %136 = vector.extract_strided_slice %127 {offsets = [0, 128], sizes = [8, 64], strides = [1, 1]} : vector<8x256xf32> to vector<8x64xf32>
    %137 = vector.extract_strided_slice %127 {offsets = [0, 192], sizes = [8, 64], strides = [1, 1]} : vector<8x256xf32> to vector<8x64xf32>
    %138 = arith.mulf %134, %137 : vector<8x64xf32>
    %139 = arith.addf %136, %138 : vector<8x64xf32>
    %140 = math.tanh %139 : vector<8x64xf32>
    %141 = arith.subf %124, %140 : vector<8x64xf32>
    %142 = arith.mulf %135, %141 : vector<8x64xf32>
    %143 = arith.addf %140, %142 : vector<8x64xf32>
    %cst_21 = arith.constant dense<0.000000e+00> : vector<8x256xf32>
    %144 = tpu.matmul %143, %6, %cst_21 {dimension_numbers = #tpu.dot_dimension_numbers<[1], [0], [0], [1], [0, 0, 1, 1], [], []>} : vector<8x64xf32>, vector<64x256xf32>, vector<8x256xf32> -> vector<8x256xf32>
    %145 = vector.extract_strided_slice %5 {offsets = [56, 0], sizes = [8, 256], strides = [1, 1]} : vector<72x256xf32> to vector<8x256xf32>
    %146 = arith.addf %144, %145 : vector<8x256xf32>
    %147 = vector.extract_strided_slice %146 {offsets = [0, 0], sizes = [8, 128], strides = [1, 1]} : vector<8x256xf32> to vector<8x128xf32>
    %148 = arith.negf %147 : vector<8x128xf32>
    %149 = math.exp %148 : vector<8x128xf32>
    %cst_22 = arith.constant 1.000000e+00 : f32
    %150 = vector.broadcast %cst_22 : f32 to vector<8x128xf32>
    %151 = arith.addf %150, %149 : vector<8x128xf32>
    %152 = arith.divf %150, %151 : vector<8x128xf32>
    %153 = vector.extract_strided_slice %152 {offsets = [0, 0], sizes = [8, 64], strides = [1, 1]} : vector<8x128xf32> to vector<8x64xf32>
    %154 = vector.extract_strided_slice %152 {offsets = [0, 64], sizes = [8, 64], strides = [1, 1]} : vector<8x128xf32> to vector<8x64xf32>
    %155 = vector.extract_strided_slice %146 {offsets = [0, 128], sizes = [8, 64], strides = [1, 1]} : vector<8x256xf32> to vector<8x64xf32>
    %156 = vector.extract_strided_slice %146 {offsets = [0, 192], sizes = [8, 64], strides = [1, 1]} : vector<8x256xf32> to vector<8x64xf32>
    %157 = arith.mulf %153, %156 : vector<8x64xf32>
    %158 = arith.addf %155, %157 : vector<8x64xf32>
    %159 = math.tanh %158 : vector<8x64xf32>
    %160 = arith.subf %143, %159 : vector<8x64xf32>
    %161 = arith.mulf %154, %160 : vector<8x64xf32>
    %162 = arith.addf %159, %161 : vector<8x64xf32>
    %cst_23 = arith.constant dense<0.000000e+00> : vector<8x256xf32>
    %163 = tpu.matmul %162, %6, %cst_23 {dimension_numbers = #tpu.dot_dimension_numbers<[1], [0], [0], [1], [0, 0, 1, 1], [], []>} : vector<8x64xf32>, vector<64x256xf32>, vector<8x256xf32> -> vector<8x256xf32>
    %164 = vector.extract_strided_slice %5 {offsets = [64, 0], sizes = [8, 256], strides = [1, 1]} : vector<72x256xf32> to vector<8x256xf32>
    %165 = arith.addf %163, %164 : vector<8x256xf32>
    %166 = vector.extract_strided_slice %165 {offsets = [0, 0], sizes = [8, 128], strides = [1, 1]} : vector<8x256xf32> to vector<8x128xf32>
    %167 = arith.negf %166 : vector<8x128xf32>
    %168 = math.exp %167 : vector<8x128xf32>
    %cst_24 = arith.constant 1.000000e+00 : f32
    %169 = vector.broadcast %cst_24 : f32 to vector<8x128xf32>
    %170 = arith.addf %169, %168 : vector<8x128xf32>
    %171 = arith.divf %169, %170 : vector<8x128xf32>
    %172 = vector.extract_strided_slice %171 {offsets = [0, 0], sizes = [8, 64], strides = [1, 1]} : vector<8x128xf32> to vector<8x64xf32>
    %173 = vector.extract_strided_slice %171 {offsets = [0, 64], sizes = [8, 64], strides = [1, 1]} : vector<8x128xf32> to vector<8x64xf32>
    %174 = vector.extract_strided_slice %165 {offsets = [0, 128], sizes = [8, 64], strides = [1, 1]} : vector<8x256xf32> to vector<8x64xf32>
    %175 = vector.extract_strided_slice %165 {offsets = [0, 192], sizes = [8, 64], strides = [1, 1]} : vector<8x256xf32> to vector<8x64xf32>
    %176 = arith.mulf %172, %175 : vector<8x64xf32>
    %177 = arith.addf %174, %176 : vector<8x64xf32>
    %178 = math.tanh %177 : vector<8x64xf32>
    %179 = arith.subf %162, %178 : vector<8x64xf32>
    %180 = arith.mulf %173, %179 : vector<8x64xf32>
    %181 = arith.addf %178, %180 : vector<8x64xf32>
    %c0_25 = arith.constant 0 : index
    %c0_26 = arith.constant 0 : index
    %182 = vector.load %arg5[%c0_25, %c0_26] : memref<64x1xf32, #tpu.memory_space<vmem>>, vector<64x1xf32>
    %cst_27 = arith.constant dense<0.000000e+00> : vector<8x1xf32>
    %183 = tpu.matmul %181, %182, %cst_27 {dimension_numbers = #tpu.dot_dimension_numbers<[1], [0], [0], [1], [0, 0, 1, 1], [], []>} : vector<8x64xf32>, vector<64x1xf32>, vector<8x1xf32> -> vector<8x1xf32>
    %c0_28 = arith.constant 0 : index
    %c0_29 = arith.constant 0 : index
    %184 = vector.load %arg6[%c0_28, %c0_29] : memref<1x1xf32, #tpu.memory_space<vmem>>, vector<1x1xf32>
    %185 = vector.broadcast %184 : vector<1x1xf32> to vector<8x1xf32>
    %186 = arith.addf %183, %185 : vector<8x1xf32>
    %c0_30 = arith.constant 0 : index
    %c0_31 = arith.constant 0 : index
    %187 = vector.load %arg7[%c0_30, %c0_31] : memref<8x1xf32, #tpu.memory_space<vmem>>, vector<8x1xf32>
    tpu.vector_store %arg7[%c0_30, %c0_31], %186 {strides = array<i32>} : memref<8x1xf32, #tpu.memory_space<vmem>>, vector<8x1xf32>,
    return
  }
  func.func @transform_0(%arg0: i32) -> (i32, i32) {
    %c0_i32 = arith.constant 0 : i32
    %c0_i32_0 = arith.constant 0 : i32
    %c0_i32_1 = arith.constant 0 : i32
    return %c0_i32, %c0_i32_0 : i32, i32
  }
  func.func @transform_1(%arg0: i32) -> (i32, i32) {
    %c0_i32 = arith.constant 0 : i32
    %c0_i32_0 = arith.constant 0 : i32
    %c0_i32_1 = arith.constant 0 : i32
    return %c0_i32, %c0_i32_0 : i32, i32
  }
  func.func @transform_2(%arg0: i32) -> (i32, i32) {
    %c0_i32 = arith.constant 0 : i32
    %c0_i32_0 = arith.constant 0 : i32
    %c0_i32_1 = arith.constant 0 : i32
    return %c0_i32, %c0_i32_0 : i32, i32
  }
  func.func @transform_3(%arg0: i32) -> (i32, i32) {
    %c0_i32 = arith.constant 0 : i32
    %c0_i32_0 = arith.constant 0 : i32
    %c0_i32_1 = arith.constant 0 : i32
    return %c0_i32, %c0_i32_0 : i32, i32
  }
  func.func @transform_4(%arg0: i32) -> (i32, i32) {
    %c0_i32 = arith.constant 0 : i32
    %c0_i32_0 = arith.constant 0 : i32
    %c0_i32_1 = arith.constant 0 : i32
    return %c0_i32, %c0_i32_0 : i32, i32
  }
  func.func @transform_5(%arg0: i32) -> (i32, i32) {
    %c0_i32 = arith.constant 0 : i32
    %c0_i32_0 = arith.constant 0 : i32
    %c0_i32_1 = arith.constant 0 : i32
    return %c0_i32, %c0_i32_0 : i32, i32
  }
  func.func @transform_6(%arg0: i32) -> (i32, i32) {
    %c0_i32 = arith.constant 0 : i32
    %c0_i32_0 = arith.constant 0 : i32
    %c0_i32_1 = arith.constant 0 : i32
    return %c0_i32, %c0_i32_0 : i32, i32
  }
}

</mosaic_0001>

<llo_original>
// kernel: tpu_custom_call.1
$region0: #{tpu_custom_call.1}
  #allocation0 [shape = 'u32[]', space=smem, size = 0x4, offset = 0x4, fixed_abs, tag = 'smem constant byte address 0x4 - core index']
  #allocation1 [shape = 'u32[144,128]{1,0:T(1,128)}', space=vmem, size = 0x12000, scoped, tag = 'internal scratch']
  #allocation2 [shape = 'f32[1,1]{1,0:T(1,128)S(1)}', space=vmem, size = 0x200, scoped, tag = 'scoped memory for tpu_custom_call.1']
  %s0 = inlined_call_operand.vmem [shape: f32[72,6], index: 0, kind: input, shape index: {}]
  %s1 = inlined_call_operand.vmem [shape: f32[6,256], index: 1, kind: input, shape index: {}]
  %s2 = inlined_call_operand.vmem [shape: f32[1,256], index: 2, kind: input, shape index: {}]
  %s3 = inlined_call_operand.vmem [shape: f32[64,256], index: 3, kind: input, shape index: {}]
  %s4 = inlined_call_operand.vmem [shape: f32[64,1], index: 4, kind: input, shape index: {}]
  %s5 = inlined_call_operand.<no memory space> [shape: f32[1,1], index: 5, kind: input, shape index: {}]
  %s6 = inlined_call_operand.vmem [shape: f32[8,1], index: 6, kind: output, shape index: {}]
  %s7 = sld [smem:[#allocation0]]
  $region34: #{tpu_custom_call.1} parent=0
    _
  %s9 = ssub.s32 1, %s7
  %s10 = scalar_select 0, %s9, %s7
  %v11 = vstv %s5
  %12 = vst [vmem:[#allocation2] sm:$0x1] %v11
  // Predicated region
  $region2: #{tpu_custom_call.1} parent=0 // pred_check
    _
  $region3: #{tpu_custom_call.1} parent=0 // pred_check_branch
    %14 = sbr.rel (0) target = $region5
  $region4: #{tpu_custom_call.1} parent=0 // pred_region
    _
  $region5: #{tpu_custom_call.1} parent=0 // pred_fallthru
    _
  // Predicated region
  $region6: #{tpu_custom_call.1} parent=0 // pred_check
    _
  $region7: #{tpu_custom_call.1} parent=0 // pred_check_branch
    %16 = sbr.rel (0) target = $region9
  $region8: #{tpu_custom_call.1} parent=0 // pred_region
    _
  $region9: #{tpu_custom_call.1} parent=0 // pred_fallthru
    _
  // Predicated region
  $region10: #{tpu_custom_call.1} parent=0 // pred_check
    _
  $region11: #{tpu_custom_call.1} parent=0 // pred_check_branch
    %18 = sbr.rel (0) target = $region13
  $region12: #{tpu_custom_call.1} parent=0 // pred_region
    _
  $region13: #{tpu_custom_call.1} parent=0 // pred_fallthru
    _
  // Predicated region
  $region14: #{tpu_custom_call.1} parent=0 // pred_check
    _
  $region15: #{tpu_custom_call.1} parent=0 // pred_check_branch
    %20 = sbr.rel (0) target = $region17
  $region16: #{tpu_custom_call.1} parent=0 // pred_region
    _
  $region17: #{tpu_custom_call.1} parent=0 // pred_fallthru
    _
  // Predicated region
  $region18: #{tpu_custom_call.1} parent=0 // pred_check
    _
  $region19: #{tpu_custom_call.1} parent=0 // pred_check_branch
    %22 = sbr.rel (0) target = $region21
  $region20: #{tpu_custom_call.1} parent=0 // pred_region
    _
  $region21: #{tpu_custom_call.1} parent=0 // pred_fallthru
    _
  // Predicated region
  $region22: #{tpu_custom_call.1} parent=0 // pred_check
    _
  $region23: #{tpu_custom_call.1} parent=0 // pred_check_branch
    %24 = sbr.rel (0) target = $region25
  $region24: #{tpu_custom_call.1} parent=0 // pred_region
    _
  $region25: #{tpu_custom_call.1} parent=0 // pred_fallthru
    _
  %v25 = vld [vmem:[%s0] sm:$0xff]
  %v26 = vld [vmem:[%s0 + $0x8] sm:$0xff]
  %v27 = vld [vmem:[%s0 + $0x10] sm:$0xff]
  %v28 = vld [vmem:[%s0 + $0x18] sm:$0xff]
  %v29 = vld [vmem:[%s0 + $0x20] sm:$0xff]
  %v30 = vld [vmem:[%s0 + $0x28] sm:$0xff]
  %v31 = vld [vmem:[%s0 + $0x30] sm:$0xff]
  %v32 = vld [vmem:[%s0 + $0x38] sm:$0xff]
  %v33 = vld [vmem:[%s0 + $0x40] sm:$0xff]
  %v34 = vld [vmem:[%s1] sm:$0x3f]
  %v35 = vld [vmem:[%s1 + $0x8] sm:$0x3f]
  %v36 = vld [vmem:[%s2] sm:$0x3]
  %v38 = vlaneseq
  %v39 = vshrl.u32 %v38, 7
  %v40 = vsub.s32 0, %v39
  %v41 = vrot.slane %v36, %v40
  %v42 = vlaneseq
  %v43 = vshrl.u32 %v42, 7
  %v44 = vsub.s32 1, %v43
  %v45 = vrot.slane %v36, %v44
  %vm48 = vcmask 48128
  %v50 = vsel %vm48, %v25, 0
  %v53 = vsel %vm48, %v26, 0
  %v56 = vsel %vm48, %v27, 0
  %v59 = vsel %vm48, %v28, 0
  %v62 = vsel %vm48, %v29, 0
  %v65 = vsel %vm48, %v30, 0
  %v68 = vsel %vm48, %v31, 0
  %v71 = vsel %vm48, %v32, 0
  %v74 = vsel %vm48, %v33, 0
  %vm76 = vcmask 1045504
  %v78 = vsel %vm76, %v34, 0
  %v81 = vsel %vm76, %v35, 0
  %83 = vmatprep.subr.mxu0 %v81
  %84 = vmatpush1.msra.mxu0 %v78
  %85 = vmatprep.subr.mxu0 0.0
  %86 = vmatpush1.msra.mxu0 0.0
  %87 = vmatprep.subr.mxu0 0.0
  %88 = vmatpush1.msra.mxu0 0.0
  %89 = vmatprep.subr.mxu0 0.0
  %90 = vmatpush1.msra.mxu0 0.0
  %91 = vmatprep.subr.mxu0 0.0
  %92 = vmatpush1.msra.mxu0 0.0
  %93 = vmatprep.subr.mxu0 0.0
  %94 = vmatpush1.msra.mxu0 0.0
  %95 = vmatprep.subr.mxu0 0.0
  %96 = vmatpush1.msra.mxu0 0.0
  %97 = vmatprep.subr.mxu0 0.0
  %98 = vmatpush1.msra.mxu0 0.0
  %99 = vmatprep.subr.mxu0 0.0
  %100 = vmatpush1.msra.mxu0 0.0
  %101 = vmatprep.subr.mxu0 0.0
  %102 = vmatpush1.msra.mxu0 0.0
  %103 = vmatprep.subr.mxu0 0.0
  %104 = vmatpush1.msra.mxu0 0.0
  %105 = vmatprep.subr.mxu0 0.0
  %106 = vmatpush1.msra.mxu0 0.0
  %107 = vmatprep.subr.mxu0 0.0
  %108 = vmatpush1.msra.mxu0 0.0
  %109 = vmatprep.subr.mxu0 0.0
  %110 = vmatpush1.msra.mxu0 0.0
  %111 = vmatprep.subr.mxu0 0.0
  %112 = vmatpush1.msra.mxu0 0.0
  %113 = vmatprep.subr.mxu0 0.0
  %114 = vmatpush1.msra.mxu0 0.0
  %115 = vmatprep.subr.mxu0 0.0
  %116 = vmatpush1.msra.mxu0 0.0
  %117 = vmatprep.subr.mxu0 0.0
  %118 = vmatpush1.msra.mxu0 0.0
  %119 = vmatprep.subr.mxu0 0.0
  %120 = vmatpush1.msra.mxu0 0.0
  %121 = vmatprep.subr.mxu0 0.0
  %122 = vmatpush1.msra.mxu0 0.0
  %123 = vmatprep.subr.mxu0 0.0
  %124 = vmatpush1.msra.mxu0 0.0
  %125 = vmatprep.subr.mxu0 0.0
  %126 = vmatpush1.msra.mxu0 0.0
  %127 = vmatprep.subr.mxu0 0.0
  %128 = vmatpush1.msra.mxu0 0.0
  %129 = vmatprep.subr.mxu0 0.0
  %130 = vmatpush1.msra.mxu0 0.0
  %131 = vmatprep.subr.mxu0 0.0
  %132 = vmatpush1.msra.mxu0 0.0
  %133 = vmatprep.subr.mxu0 0.0
  %134 = vmatpush1.msra.mxu0 0.0
  %135 = vmatprep.subr.mxu0 0.0
  %136 = vmatpush1.msra.mxu0 0.0
  %137 = vmatprep.subr.mxu0 0.0
  %138 = vmatpush1.msra.mxu0 0.0
  %139 = vmatprep.subr.mxu0 0.0
  %140 = vmatpush1.msra.mxu0 0.0
  %141 = vmatprep.subr.mxu0 0.0
  %142 = vmatpush1.msra.mxu0 0.0
  %143 = vmatprep.subr.mxu0 0.0
  %144 = vmatpush1.msra.mxu0 0.0
  %145 = vmatprep.subr.mxu0 0.0
  %146 = vmatpush1.msra.mxu0 0.0
  %147 = vmatprep.mubr.f32.mxu0 0.0
  %148 = vmatmul.mubr.f32.gmra.mrb[0].mxu0 %v50
  %v149 = vpop.f32.mrb[0].mxu0
  %v150 = vadd.f32 %v41, %v149
  %v151 = vpop.f32.mrb[0].mxu0
  %v152 = vadd.f32 %v45, %v151
  %153 = vmatprep.mubr.f32.mxu0 0.0
  %154 = vmatmul.mubr.f32.gmra.mrb[0].mxu0 %v53
  %v155 = vpop.f32.mrb[0].mxu0
  %v156 = vadd.f32 %v41, %v155
  %v157 = vpop.f32.mrb[0].mxu0
  %v158 = vadd.f32 %v45, %v157
  %159 = vmatprep.mubr.f32.mxu0 0.0
  %160 = vmatmul.mubr.f32.gmra.mrb[0].mxu0 %v56
  %v161 = vpop.f32.mrb[0].mxu0
  %v162 = vadd.f32 %v41, %v161
  %v163 = vpop.f32.mrb[0].mxu0
  %v164 = vadd.f32 %v45, %v163
  %165 = vmatprep.mubr.f32.mxu0 0.0
  %166 = vmatmul.mubr.f32.gmra.mrb[0].mxu0 %v59
  %v167 = vpop.f32.mrb[0].mxu0
  %v168 = vadd.f32 %v41, %v167
  %v169 = vpop.f32.mrb[0].mxu0
  %v170 = vadd.f32 %v45, %v169
  %171 = vmatprep.mubr.f32.mxu0 0.0
  %172 = vmatmul.mubr.f32.gmra.mrb[0].mxu0 %v62
  %v173 = vpop.f32.mrb[0].mxu0
  %v174 = vadd.f32 %v41, %v173
  %v175 = vpop.f32.mrb[0].mxu0
  %v176 = vadd.f32 %v45, %v175
  %177 = vmatprep.mubr.f32.mxu0 0.0
  %178 = vmatmul.mubr.f32.gmra.mrb[0].mxu0 %v65
  %v179 = vpop.f32.mrb[0].mxu0
  %v180 = vadd.f32 %v41, %v179
  %v181 = vpop.f32.mrb[0].mxu0
  %v182 = vadd.f32 %v45, %v181
  %183 = vmatprep.mubr.f32.mxu0 0.0
  %184 = vmatmul.mubr.f32.gmra.mrb[0].mxu0 %v68
  %v185 = vpop.f32.mrb[0].mxu0
  %v186 = vadd.f32 %v41, %v185
  %v187 = vpop.f32.mrb[0].mxu0
  %v188 = vadd.f32 %v45, %v187
  %189 = vmatprep.mubr.f32.mxu0 0.0
  %190 = vmatmul.mubr.f32.gmra.mrb[0].mxu0 %v71
  %v191 = vpop.f32.mrb[0].mxu0
  %v192 = vadd.f32 %v41, %v191
  %v193 = vpop.f32.mrb[0].mxu0
  %v194 = vadd.f32 %v45, %v193
  %195 = vmatprep.mubr.f32.mxu0 0.0
  %196 = vmatmul.mubr.f32.gmra.mrb[0].mxu0 %v74
  %v197 = vpop.f32.mrb[0].mxu0
  %v198 = vadd.f32 %v41, %v197
  %v199 = vpop.f32.mrb[0].mxu0
  %v200 = vadd.f32 %v45, %v199
  %201 = vdwg.mxu0
  %v202 = vld [vmem:[%s3] sm:$0xff]
  %v203 = vld [vmem:[%s3 + $0x8] sm:$0xff]
  %v204 = vld [vmem:[%s3 + $0x10] sm:$0xff]
  %v205 = vld [vmem:[%s3 + $0x18] sm:$0xff]
  %v206 = vld [vmem:[%s3 + $0x20] sm:$0xff]
  %v207 = vld [vmem:[%s3 + $0x28] sm:$0xff]
  %v208 = vld [vmem:[%s3 + $0x30] sm:$0xff]
  %v209 = vld [vmem:[%s3 + $0x38] sm:$0xff]
  %v210 = vld [vmem:[%s3 + $0x40] sm:$0xff]
  %v211 = vld [vmem:[%s3 + $0x48] sm:$0xff]
  %v212 = vld [vmem:[%s3 + $0x50] sm:$0xff]
  %v213 = vld [vmem:[%s3 + $0x58] sm:$0xff]
  %v214 = vld [vmem:[%s3 + $0x60] sm:$0xff]
  %v215 = vld [vmem:[%s3 + $0x68] sm:$0xff]
  %v216 = vld [vmem:[%s3 + $0x70] sm:$0xff]
  %v217 = vld [vmem:[%s3 + $0x78] sm:$0xff]
  %v218 = vlaneseq
  %v219 = vand.u32 %v218, 127
  %vm220 = vcmp.lt.s32.totalorder %v219, 32
  %v221 = vsel %vm220, 1, 0
  %v222 = vcvt.s32.f32 %v221
  %v223 = vxor.u32 %v150, 2147483648
  %v224 = vmul.f32 %v223, 1.442695
  %v225 = vpow.pop %v224
  %v226 = vadd.f32 %v225, 1.0
  %v227 = vrcp.pop %v226
  %v228 = vmul.f32 1.0, %v227
  %230 = vrot.lane.b32.xlu0 %v152, 64
  %v231 = vpop.permute.xlu0 %230
  %v233 = vmul.f32 %v228, %v231
  %v234 = vadd.f32 %v152, %v233
  %v235 = vtanh.pop %v234
  %v236 = vsub.f32 1.0, %v228
  %238 = vrot.lane.b32.xlu0 %v235, 64
  %v239 = vpop.permute.xlu0 %238
  %v241 = vmul.f32 %v236, %v239
  %243 = vrot.lane.b32.xlu0 %v222, 64
  %v244 = vpop.permute.xlu0 %243
  %v246 = vmul.f32 %v241, %v244
  %248 = vrot.lane.b32.xlu0 %v246, 64
  %v249 = vpop.permute.xlu0 %248
  %vm250 = vcmask 523264
  %v251 = vsel %vm250, %v249, 0
  %253 = vmatprep.subr.mxu0 %v203
  %254 = vmatpush1.msra.mxu0 %v202
  %255 = vmatprep.subr.mxu0 %v205
  %256 = vmatpush1.msra.mxu0 %v204
  %257 = vmatprep.subr.mxu0 %v207
  %258 = vmatpush1.msra.mxu0 %v206
  %259 = vmatprep.subr.mxu0 %v209
  %260 = vmatpush1.msra.mxu0 %v208
  %261 = vmatprep.subr.mxu0 %v211
  %262 = vmatpush1.msra.mxu0 %v210
  %263 = vmatprep.subr.mxu0 %v213
  %264 = vmatpush1.msra.mxu0 %v212
  %265 = vmatprep.subr.mxu0 %v215
  %266 = vmatpush1.msra.mxu0 %v214
  %267 = vmatprep.subr.mxu0 %v217
  %268 = vmatpush1.msra.mxu0 %v216
  %269 = vmatprep.subr.mxu0 0.0
  %270 = vmatpush1.msra.mxu0 0.0
  %271 = vmatprep.subr.mxu0 0.0
  %272 = vmatpush1.msra.mxu0 0.0
  %273 = vmatprep.subr.mxu0 0.0
  %274 = vmatpush1.msra.mxu0 0.0
  %275 = vmatprep.subr.mxu0 0.0
  %276 = vmatpush1.msra.mxu0 0.0
  %277 = vmatprep.subr.mxu0 0.0
  %278 = vmatpush1.msra.mxu0 0.0
  %279 = vmatprep.subr.mxu0 0.0
  %280 = vmatpush1.msra.mxu0 0.0
  %281 = vmatprep.subr.mxu0 0.0
  %282 = vmatpush1.msra.mxu0 0.0
  %283 = vmatprep.subr.mxu0 0.0
  %284 = vmatpush1.msra.mxu0 0.0
  %285 = vmatprep.subr.mxu0 0.0
  %286 = vmatpush1.msra.mxu0 0.0
  %287 = vmatprep.subr.mxu0 0.0
  %288 = vmatpush1.msra.mxu0 0.0
  %289 = vmatprep.subr.mxu0 0.0
  %290 = vmatpush1.msra.mxu0 0.0
  %291 = vmatprep.subr.mxu0 0.0
  %292 = vmatpush1.msra.mxu0 0.0
  %293 = vmatprep.subr.mxu0 0.0
  %294 = vmatpush1.msra.mxu0 0.0
  %295 = vmatprep.subr.mxu0 0.0
  %296 = vmatpush1.msra.mxu0 0.0
  %297 = vmatprep.subr.mxu0 0.0
  %298 = vmatpush1.msra.mxu0 0.0
  %299 = vmatprep.subr.mxu0 0.0
  %300 = vmatpush1.msra.mxu0 0.0
  %301 = vmatprep.subr.mxu0 0.0
  %302 = vmatpush1.msra.mxu0 0.0
  %303 = vmatprep.subr.mxu0 0.0
  %304 = vmatpush1.msra.mxu0 0.0
  %305 = vmatprep.subr.mxu0 0.0
  %306 = vmatpush1.msra.mxu0 0.0
  %307 = vmatprep.subr.mxu0 0.0
  %308 = vmatpush1.msra.mxu0 0.0
  %309 = vmatprep.subr.mxu0 0.0
  %310 = vmatpush1.msra.mxu0 0.0
  %311 = vmatprep.subr.mxu0 0.0
  %312 = vmatpush1.msra.mxu0 0.0
  %313 = vmatprep.subr.mxu0 0.0
  %314 = vmatpush1.msra.mxu0 0.0
  %315 = vmatprep.subr.mxu0 0.0
  %316 = vmatpush1.msra.mxu0 0.0
  %317 = vmatprep.mubr.f32.mxu0 0.0
  %318 = vmatmul.mubr.f32.gmra.mrb[0].mxu0 %v251
  %v319 = vpop.f32.mrb[0].mxu0
  %v320 = vadd.f32 %v156, %v319
  %v321 = vpop.f32.mrb[0].mxu0
  %v322 = vadd.f32 %v158, %v321
  %323 = vdwg.mxu0
  %v324 = vxor.u32 %v320, 2147483648
  %v325 = vmul.f32 %v324, 1.442695
  %v326 = vpow.pop %v325
  %v327 = vadd.f32 %v326, 1.0
  %v328 = vrcp.pop %v327
  %v329 = vmul.f32 1.0, %v328
  %331 = vrot.lane.b32.xlu0 %v322, 64
  %v332 = vpop.permute.xlu0 %331
  %v334 = vmul.f32 %v329, %v332
  %v335 = vadd.f32 %v322, %v334
  %v336 = vtanh.pop %v335
  %338 = vrot.lane.b32.xlu0 %v336, 64
  %v339 = vpop.permute.xlu0 %338
  %v341 = vsub.f32 %v246, %v339
  %v342 = vmul.f32 %v329, %v341
  %344 = vrot.lane.b32.xlu0 %v342, 64
  %v345 = vpop.permute.xlu0 %344
  %v347 = vadd.f32 %v336, %v345
  %v349 = vsel %vm250, %v347, 0
  %351 = vmatprep.subr.mxu0 %v203
  %352 = vmatpush1.msra.mxu0 %v202
  %353 = vmatprep.subr.mxu0 %v205
  %354 = vmatpush1.msra.mxu0 %v204
  %355 = vmatprep.subr.mxu0 %v207
  %356 = vmatpush1.msra.mxu0 %v206
  %357 = vmatprep.subr.mxu0 %v209
  %358 = vmatpush1.msra.mxu0 %v208
  %359 = vmatprep.subr.mxu0 %v211
  %360 = vmatpush1.msra.mxu0 %v210
  %361 = vmatprep.subr.mxu0 %v213
  %362 = vmatpush1.msra.mxu0 %v212
  %363 = vmatprep.subr.mxu0 %v215
  %364 = vmatpush1.msra.mxu0 %v214
  %365 = vmatprep.subr.mxu0 %v217
  %366 = vmatpush1.msra.mxu0 %v216
  %367 = vmatprep.subr.mxu0 0.0
  %368 = vmatpush1.msra.mxu0 0.0
  %369 = vmatprep.subr.mxu0 0.0
  %370 = vmatpush1.msra.mxu0 0.0
  %371 = vmatprep.subr.mxu0 0.0
  %372 = vmatpush1.msra.mxu0 0.0
  %373 = vmatprep.subr.mxu0 0.0
  %374 = vmatpush1.msra.mxu0 0.0
  %375 = vmatprep.subr.mxu0 0.0
  %376 = vmatpush1.msra.mxu0 0.0
  %377 = vmatprep.subr.mxu0 0.0
  %378 = vmatpush1.msra.mxu0 0.0
  %379 = vmatprep.subr.mxu0 0.0
  %380 = vmatpush1.msra.mxu0 0.0
  %381 = vmatprep.subr.mxu0 0.0
  %382 = vmatpush1.msra.mxu0 0.0
  %383 = vmatprep.subr.mxu0 0.0
  %384 = vmatpush1.msra.mxu0 0.0
  %385 = vmatprep.subr.mxu0 0.0
  %386 = vmatpush1.msra.mxu0 0.0
  %387 = vmatprep.subr.mxu0 0.0
  %388 = vmatpush1.msra.mxu0 0.0
  %389 = vmatprep.subr.mxu0 0.0
  %390 = vmatpush1.msra.mxu0 0.0
  %391 = vmatprep.subr.mxu0 0.0
  %392 = vmatpush1.msra.mxu0 0.0
  %393 = vmatprep.subr.mxu0 0.0
  %394 = vmatpush1.msra.mxu0 0.0
  %395 = vmatprep.subr.mxu0 0.0
  %396 = vmatpush1.msra.mxu0 0.0
  %397 = vmatprep.subr.mxu0 0.0
  %398 = vmatpush1.msra.mxu0 0.0
  %399 = vmatprep.subr.mxu0 0.0
  %400 = vmatpush1.msra.mxu0 0.0
  %401 = vmatprep.subr.mxu0 0.0
  %402 = vmatpush1.msra.mxu0 0.0
  %403 = vmatprep.subr.mxu0 0.0
  %404 = vmatpush1.msra.mxu0 0.0
  %405 = vmatprep.subr.mxu0 0.0
  %406 = vmatpush1.msra.mxu0 0.0
  %407 = vmatprep.subr.mxu0 0.0
  %408 = vmatpush1.msra.mxu0 0.0
  %409 = vmatprep.subr.mxu0 0.0
  %410 = vmatpush1.msra.mxu0 0.0
  %411 = vmatprep.subr.mxu0 0.0
  %412 = vmatpush1.msra.mxu0 0.0
  %413 = vmatprep.subr.mxu0 0.0
  %414 = vmatpush1.msra.mxu0 0.0
  %415 = vmatprep.mubr.f32.mxu0 0.0
  %416 = vmatmul.mubr.f32.gmra.mrb[0].mxu0 %v349
  %v417 = vpop.f32.mrb[0].mxu0
  %v418 = vadd.f32 %v162, %v417
  %v419 = vpop.f32.mrb[0].mxu0
  %v420 = vadd.f32 %v164, %v419
  %421 = vdwg.mxu0
  %v422 = vxor.u32 %v418, 2147483648
  %v423 = vmul.f32 %v422, 1.442695
  %v424 = vpow.pop %v423
  %v425 = vadd.f32 %v424, 1.0
  %v426 = vrcp.pop %v425
  %v427 = vmul.f32 1.0, %v426
  %429 = vrot.lane.b32.xlu0 %v420, 64
  %v430 = vpop.permute.xlu0 %429
  %v432 = vmul.f32 %v427, %v430
  %v433 = vadd.f32 %v420, %v432
  %v434 = vtanh.pop %v433
  %v435 = vsub.f32 %v347, %v434
  %437 = vrot.lane.b32.xlu0 %v435, 64
  %v438 = vpop.permute.xlu0 %437
  %v440 = vmul.f32 %v427, %v438
  %442 = vrot.lane.b32.xlu0 %v440, 64
  %v443 = vpop.permute.xlu0 %442
  %v445 = vadd.f32 %v434, %v443
  %v447 = vsel %vm250, %v445, 0
  %449 = vmatprep.subr.mxu0 %v203
  %450 = vmatpush1.msra.mxu0 %v202
  %451 = vmatprep.subr.mxu0 %v205
  %452 = vmatpush1.msra.mxu0 %v204
  %453 = vmatprep.subr.mxu0 %v207
  %454 = vmatpush1.msra.mxu0 %v206
  %455 = vmatprep.subr.mxu0 %v209
  %456 = vmatpush1.msra.mxu0 %v208
  %457 = vmatprep.subr.mxu0 %v211
  %458 = vmatpush1.msra.mxu0 %v210
  %459 = vmatprep.subr.mxu0 %v213
  %460 = vmatpush1.msra.mxu0 %v212
  %461 = vmatprep.subr.mxu0 %v215
  %462 = vmatpush1.msra.mxu0 %v214
  %463 = vmatprep.subr.mxu0 %v217
  %464 = vmatpush1.msra.mxu0 %v216
  %465 = vmatprep.subr.mxu0 0.0
  %466 = vmatpush1.msra.mxu0 0.0
  %467 = vmatprep.subr.mxu0 0.0
  %468 = vmatpush1.msra.mxu0 0.0
  %469 = vmatprep.subr.mxu0 0.0
  %470 = vmatpush1.msra.mxu0 0.0
  %471 = vmatprep.subr.mxu0 0.0
  %472 = vmatpush1.msra.mxu0 0.0
  %473 = vmatprep.subr.mxu0 0.0
  %474 = vmatpush1.msra.mxu0 0.0
  %475 = vmatprep.subr.mxu0 0.0
  %476 = vmatpush1.msra.mxu0 0.0
  %477 = vmatprep.subr.mxu0 0.0
  %478 = vmatpush1.msra.mxu0 0.0
  %479 = vmatprep.subr.mxu0 0.0
  %480 = vmatpush1.msra.mxu0 0.0
  %481 = vmatprep.subr.mxu0 0.0
  %482 = vmatpush1.msra.mxu0 0.0
  %483 = vmatprep.subr.mxu0 0.0
  %484 = vmatpush1.msra.mxu0 0.0
  %485 = vmatprep.subr.mxu0 0.0
  %486 = vmatpush1.msra.mxu0 0.0
  %487 = vmatprep.subr.mxu0 0.0
  %488 = vmatpush1.msra.mxu0 0.0
  %489 = vmatprep.subr.mxu0 0.0
  %490 = vmatpush1.msra.mxu0 0.0
  %491 = vmatprep.subr.mxu0 0.0
  %492 = vmatpush1.msra.mxu0 0.0
  %493 = vmatprep.subr.mxu0 0.0
  %494 = vmatpush1.msra.mxu0 0.0
  %495 = vmatprep.subr.mxu0 0.0
  %496 = vmatpush1.msra.mxu0 0.0
  %497 = vmatprep.subr.mxu0 0.0
  %498 = vmatpush1.msra.mxu0 0.0
  %499 = vmatprep.subr.mxu0 0.0
  %500 = vmatpush1.msra.mxu0 0.0
  %501 = vmatprep.subr.mxu0 0.0
  %502 = vmatpush1.msra.mxu0 0.0
  %503 = vmatprep.subr.mxu0 0.0
  %504 = vmatpush1.msra.mxu0 0.0
  %505 = vmatprep.subr.mxu0 0.0
  %506 = vmatpush1.msra.mxu0 0.0
  %507 = vmatprep.subr.mxu0 0.0
  %508 = vmatpush1.msra.mxu0 0.0
  %509 = vmatprep.subr.mxu0 0.0
  %510 = vmatpush1.msra.mxu0 0.0
  %511 = vmatprep.subr.mxu0 0.0
  %512 = vmatpush1.msra.mxu0 0.0
  %513 = vmatprep.mubr.f32.mxu0 0.0
  %514 = vmatmul.mubr.f32.gmra.mrb[0].mxu0 %v447
  %v515 = vpop.f32.mrb[0].mxu0
  %v516 = vadd.f32 %v168, %v515
  %v517 = vpop.f32.mrb[0].mxu0
  %v518 = vadd.f32 %v170, %v517
  %519 = vdwg.mxu0
  %v520 = vxor.u32 %v516, 2147483648
  %v521 = vmul.f32 %v520, 1.442695
  %v522 = vpow.pop %v521
  %v523 = vadd.f32 %v522, 1.0
  %v524 = vrcp.pop %v523
  %v525 = vmul.f32 1.0, %v524
  %527 = vrot.lane.b32.xlu0 %v518, 64
  %v528 = vpop.permute.xlu0 %527
  %v530 = vmul.f32 %v525, %v528
  %v531 = vadd.f32 %v518, %v530
  %v532 = vtanh.pop %v531
  %v533 = vsub.f32 %v445, %v532
  %535 = vrot.lane.b32.xlu0 %v533, 64
  %v536 = vpop.permute.xlu0 %535
  %v538 = vmul.f32 %v525, %v536
  %540 = vrot.lane.b32.xlu0 %v538, 64
  %v541 = vpop.permute.xlu0 %540
  %v543 = vadd.f32 %v532, %v541
  %v545 = vsel %vm250, %v543, 0
  %547 = vmatprep.subr.mxu0 %v203
  %548 = vmatpush1.msra.mxu0 %v202
  %549 = vmatprep.subr.mxu0 %v205
  %550 = vmatpush1.msra.mxu0 %v204
  %551 = vmatprep.subr.mxu0 %v207
  %552 = vmatpush1.msra.mxu0 %v206
  %553 = vmatprep.subr.mxu0 %v209
  %554 = vmatpush1.msra.mxu0 %v208
  %555 = vmatprep.subr.mxu0 %v211
  %556 = vmatpush1.msra.mxu0 %v210
  %557 = vmatprep.subr.mxu0 %v213
  %558 = vmatpush1.msra.mxu0 %v212
  %559 = vmatprep.subr.mxu0 %v215
  %560 = vmatpush1.msra.mxu0 %v214
  %561 = vmatprep.subr.mxu0 %v217
  %562 = vmatpush1.msra.mxu0 %v216
  %563 = vmatprep.subr.mxu0 0.0
  %564 = vmatpush1.msra.mxu0 0.0
  %565 = vmatprep.subr.mxu0 0.0
  %566 = vmatpush1.msra.mxu0 0.0
  %567 = vmatprep.subr.mxu0 0.0
  %568 = vmatpush1.msra.mxu0 0.0
  %569 = vmatprep.subr.mxu0 0.0
  %570 = vmatpush1.msra.mxu0 0.0
  %571 = vmatprep.subr.mxu0 0.0
  %572 = vmatpush1.msra.mxu0 0.0
  %573 = vmatprep.subr.mxu0 0.0
  %574 = vmatpush1.msra.mxu0 0.0
  %575 = vmatprep.subr.mxu0 0.0
  %576 = vmatpush1.msra.mxu0 0.0
  %577 = vmatprep.subr.mxu0 0.0
  %578 = vmatpush1.msra.mxu0 0.0
  %579 = vmatprep.subr.mxu0 0.0
  %580 = vmatpush1.msra.mxu0 0.0
  %581 = vmatprep.subr.mxu0 0.0
  %582 = vmatpush1.msra.mxu0 0.0
  %583 = vmatprep.subr.mxu0 0.0
  %584 = vmatpush1.msra.mxu0 0.0
  %585 = vmatprep.subr.mxu0 0.0
  %586 = vmatpush1.msra.mxu0 0.0
  %587 = vmatprep.subr.mxu0 0.0
  %588 = vmatpush1.msra.mxu0 0.0
  %589 = vmatprep.subr.mxu0 0.0
  %590 = vmatpush1.msra.mxu0 0.0
  %591 = vmatprep.subr.mxu0 0.0
  %592 = vmatpush1.msra.mxu0 0.0
  %593 = vmatprep.subr.mxu0 0.0
  %594 = vmatpush1.msra.mxu0 0.0
  %595 = vmatprep.subr.mxu0 0.0
  %596 = vmatpush1.msra.mxu0 0.0
  %597 = vmatprep.subr.mxu0 0.0
  %598 = vmatpush1.msra.mxu0 0.0
  %599 = vmatprep.subr.mxu0 0.0
  %600 = vmatpush1.msra.mxu0 0.0
  %601 = vmatprep.subr.mxu0 0.0
  %602 = vmatpush1.msra.mxu0 0.0
  %603 = vmatprep.subr.mxu0 0.0
  %604 = vmatpush1.msra.mxu0 0.0
  %605 = vmatprep.subr.mxu0 0.0
  %606 = vmatpush1.msra.mxu0 0.0
  %607 = vmatprep.subr.mxu0 0.0
  %608 = vmatpush1.msra.mxu0 0.0
  %609 = vmatprep.subr.mxu0 0.0
  %610 = vmatpush1.msra.mxu0 0.0
  %611 = vmatprep.mubr.f32.mxu0 0.0
  %612 = vmatmul.mubr.f32.gmra.mrb[0].mxu0 %v545
  %v613 = vpop.f32.mrb[0].mxu0
  %v614 = vadd.f32 %v174, %v613
  %v615 = vpop.f32.mrb[0].mxu0
  %v616 = vadd.f32 %v176, %v615
  %617 = vdwg.mxu0
  %v618 = vxor.u32 %v614, 2147483648
  %v619 = vmul.f32 %v618, 1.442695
  %v620 = vpow.pop %v619
  %v621 = vadd.f32 %v620, 1.0
  %v622 = vrcp.pop %v621
  %v623 = vmul.f32 1.0, %v622
  %625 = vrot.lane.b32.xlu0 %v616, 64
  %v626 = vpop.permute.xlu0 %625
  %v628 = vmul.f32 %v623, %v626
  %v629 = vadd.f32 %v616, %v628
  %v630 = vtanh.pop %v629
  %v631 = vsub.f32 %v543, %v630
  %633 = vrot.lane.b32.xlu0 %v631, 64
  %v634 = vpop.permute.xlu0 %633
  %v636 = vmul.f32 %v623, %v634
  %638 = vrot.lane.b32.xlu0 %v636, 64
  %v639 = vpop.permute.xlu0 %638
  %v641 = vadd.f32 %v630, %v639
  %v643 = vsel %vm250, %v641, 0
  %645 = vmatprep.subr.mxu0 %v203
  %646 = vmatpush1.msra.mxu0 %v202
  %647 = vmatprep.subr.mxu0 %v205
  %648 = vmatpush1.msra.mxu0 %v204
  %649 = vmatprep.subr.mxu0 %v207
  %650 = vmatpush1.msra.mxu0 %v206
  %651 = vmatprep.subr.mxu0 %v209
  %652 = vmatpush1.msra.mxu0 %v208
  %653 = vmatprep.subr.mxu0 %v211
  %654 = vmatpush1.msra.mxu0 %v210
  %655 = vmatprep.subr.mxu0 %v213
  %656 = vmatpush1.msra.mxu0 %v212
  %657 = vmatprep.subr.mxu0 %v215
  %658 = vmatpush1.msra.mxu0 %v214
  %659 = vmatprep.subr.mxu0 %v217
  %660 = vmatpush1.msra.mxu0 %v216
  %661 = vmatprep.subr.mxu0 0.0
  %662 = vmatpush1.msra.mxu0 0.0
  %663 = vmatprep.subr.mxu0 0.0
  %664 = vmatpush1.msra.mxu0 0.0
  %665 = vmatprep.subr.mxu0 0.0
  %666 = vmatpush1.msra.mxu0 0.0
  %667 = vmatprep.subr.mxu0 0.0
  %668 = vmatpush1.msra.mxu0 0.0
  %669 = vmatprep.subr.mxu0 0.0
  %670 = vmatpush1.msra.mxu0 0.0
  %671 = vmatprep.subr.mxu0 0.0
  %672 = vmatpush1.msra.mxu0 0.0
  %673 = vmatprep.subr.mxu0 0.0
  %674 = vmatpush1.msra.mxu0 0.0
  %675 = vmatprep.subr.mxu0 0.0
  %676 = vmatpush1.msra.mxu0 0.0
  %677 = vmatprep.subr.mxu0 0.0
  %678 = vmatpush1.msra.mxu0 0.0
  %679 = vmatprep.subr.mxu0 0.0
  %680 = vmatpush1.msra.mxu0 0.0
  %681 = vmatprep.subr.mxu0 0.0
  %682 = vmatpush1.msra.mxu0 0.0
  %683 = vmatprep.subr.mxu0 0.0
  %684 = vmatpush1.msra.mxu0 0.0
  %685 = vmatprep.subr.mxu0 0.0
  %686 = vmatpush1.msra.mxu0 0.0
  %687 = vmatprep.subr.mxu0 0.0
  %688 = vmatpush1.msra.mxu0 0.0
  %689 = vmatprep.subr.mxu0 0.0
  %690 = vmatpush1.msra.mxu0 0.0
  %691 = vmatprep.subr.mxu0 0.0
  %692 = vmatpush1.msra.mxu0 0.0
  %693 = vmatprep.subr.mxu0 0.0
  %694 = vmatpush1.msra.mxu0 0.0
  %695 = vmatprep.subr.mxu0 0.0
  %696 = vmatpush1.msra.mxu0 0.0
  %697 = vmatprep.subr.mxu0 0.0
  %698 = vmatpush1.msra.mxu0 0.0
  %699 = vmatprep.subr.mxu0 0.0
  %700 = vmatpush1.msra.mxu0 0.0
  %701 = vmatprep.subr.mxu0 0.0
  %702 = vmatpush1.msra.mxu0 0.0
  %703 = vmatprep.subr.mxu0 0.0
  %704 = vmatpush1.msra.mxu0 0.0
  %705 = vmatprep.subr.mxu0 0.0
  %706 = vmatpush1.msra.mxu0 0.0
  %707 = vmatprep.subr.mxu0 0.0
  %708 = vmatpush1.msra.mxu0 0.0
  %709 = vmatprep.mubr.f32.mxu0 0.0
  %710 = vmatmul.mubr.f32.gmra.mrb[0].mxu0 %v643
  %v711 = vpop.f32.mrb[0].mxu0
  %v712 = vadd.f32 %v180, %v711
  %v713 = vpop.f32.mrb[0].mxu0
  %v714 = vadd.f32 %v182, %v713
  %715 = vdwg.mxu0
  %v716 = vxor.u32 %v712, 2147483648
  %v717 = vmul.f32 %v716, 1.442695
  %v718 = vpow.pop %v717
  %v719 = vadd.f32 %v718, 1.0
  %v720 = vrcp.pop %v719
  %v721 = vmul.f32 1.0, %v720
  %723 = vrot.lane.b32.xlu0 %v714, 64
  %v724 = vpop.permute.xlu0 %723
  %v726 = vmul.f32 %v721, %v724
  %v727 = vadd.f32 %v714, %v726
  %v728 = vtanh.pop %v727
  %v729 = vsub.f32 %v641, %v728
  %731 = vrot.lane.b32.xlu0 %v729, 64
  %v732 = vpop.permute.xlu0 %731
  %v734 = vmul.f32 %v721, %v732
  %736 = vrot.lane.b32.xlu0 %v734, 64
  %v737 = vpop.permute.xlu0 %736
  %v739 = vadd.f32 %v728, %v737
  %v741 = vsel %vm250, %v739, 0
  %743 = vmatprep.subr.mxu0 %v203
  %744 = vmatpush1.msra.mxu0 %v202
  %745 = vmatprep.subr.mxu0 %v205
  %746 = vmatpush1.msra.mxu0 %v204
  %747 = vmatprep.subr.mxu0 %v207
  %748 = vmatpush1.msra.mxu0 %v206
  %749 = vmatprep.subr.mxu0 %v209
  %750 = vmatpush1.msra.mxu0 %v208
  %751 = vmatprep.subr.mxu0 %v211
  %752 = vmatpush1.msra.mxu0 %v210
  %753 = vmatprep.subr.mxu0 %v213
  %754 = vmatpush1.msra.mxu0 %v212
  %755 = vmatprep.subr.mxu0 %v215
  %756 = vmatpush1.msra.mxu0 %v214
  %757 = vmatprep.subr.mxu0 %v217
  %758 = vmatpush1.msra.mxu0 %v216
  %759 = vmatprep.subr.mxu0 0.0
  %760 = vmatpush1.msra.mxu0 0.0
  %761 = vmatprep.subr.mxu0 0.0
  %762 = vmatpush1.msra.mxu0 0.0
  %763 = vmatprep.subr.mxu0 0.0
  %764 = vmatpush1.msra.mxu0 0.0
  %765 = vmatprep.subr.mxu0 0.0
  %766 = vmatpush1.msra.mxu0 0.0
  %767 = vmatprep.subr.mxu0 0.0
  %768 = vmatpush1.msra.mxu0 0.0
  %769 = vmatprep.subr.mxu0 0.0
  %770 = vmatpush1.msra.mxu0 0.0
  %771 = vmatprep.subr.mxu0 0.0
  %772 = vmatpush1.msra.mxu0 0.0
  %773 = vmatprep.subr.mxu0 0.0
  %774 = vmatpush1.msra.mxu0 0.0
  %775 = vmatprep.subr.mxu0 0.0
  %776 = vmatpush1.msra.mxu0 0.0
  %777 = vmatprep.subr.mxu0 0.0
  %778 = vmatpush1.msra.mxu0 0.0
  %779 = vmatprep.subr.mxu0 0.0
  %780 = vmatpush1.msra.mxu0 0.0
  %781 = vmatprep.subr.mxu0 0.0
  %782 = vmatpush1.msra.mxu0 0.0
  %783 = vmatprep.subr.mxu0 0.0
  %784 = vmatpush1.msra.mxu0 0.0
  %785 = vmatprep.subr.mxu0 0.0
  %786 = vmatpush1.msra.mxu0 0.0
  %787 = vmatprep.subr.mxu0 0.0
  %788 = vmatpush1.msra.mxu0 0.0
  %789 = vmatprep.subr.mxu0 0.0
  %790 = vmatpush1.msra.mxu0 0.0
  %791 = vmatprep.subr.mxu0 0.0
  %792 = vmatpush1.msra.mxu0 0.0
  %793 = vmatprep.subr.mxu0 0.0
  %794 = vmatpush1.msra.mxu0 0.0
  %795 = vmatprep.subr.mxu0 0.0
  %796 = vmatpush1.msra.mxu0 0.0
  %797 = vmatprep.subr.mxu0 0.0
  %798 = vmatpush1.msra.mxu0 0.0
  %799 = vmatprep.subr.mxu0 0.0
  %800 = vmatpush1.msra.mxu0 0.0
  %801 = vmatprep.subr.mxu0 0.0
  %802 = vmatpush1.msra.mxu0 0.0
  %803 = vmatprep.subr.mxu0 0.0
  %804 = vmatpush1.msra.mxu0 0.0
  %805 = vmatprep.subr.mxu0 0.0
  %806 = vmatpush1.msra.mxu0 0.0
  %807 = vmatprep.mubr.f32.mxu0 0.0
  %808 = vmatmul.mubr.f32.gmra.mrb[0].mxu0 %v741
  %v809 = vpop.f32.mrb[0].mxu0
  %v810 = vadd.f32 %v186, %v809
  %v811 = vpop.f32.mrb[0].mxu0
  %v812 = vadd.f32 %v188, %v811
  %813 = vdwg.mxu0
  %v814 = vxor.u32 %v810, 2147483648
  %v815 = vmul.f32 %v814, 1.442695
  %v816 = vpow.pop %v815
  %v817 = vadd.f32 %v816, 1.0
  %v818 = vrcp.pop %v817
  %v819 = vmul.f32 1.0, %v818
  %821 = vrot.lane.b32.xlu0 %v812, 64
  %v822 = vpop.permute.xlu0 %821
  %v824 = vmul.f32 %v819, %v822
  %v825 = vadd.f32 %v812, %v824
  %v826 = vtanh.pop %v825
  %v827 = vsub.f32 %v739, %v826
  %829 = vrot.lane.b32.xlu0 %v827, 64
  %v830 = vpop.permute.xlu0 %829
  %v832 = vmul.f32 %v819, %v830
  %834 = vrot.lane.b32.xlu0 %v832, 64
  %v835 = vpop.permute.xlu0 %834
  %v837 = vadd.f32 %v826, %v835
  %v839 = vsel %vm250, %v837, 0
  %841 = vmatprep.subr.mxu0 %v203
  %842 = vmatpush1.msra.mxu0 %v202
  %843 = vmatprep.subr.mxu0 %v205
  %844 = vmatpush1.msra.mxu0 %v204
  %845 = vmatprep.subr.mxu0 %v207
  %846 = vmatpush1.msra.mxu0 %v206
  %847 = vmatprep.subr.mxu0 %v209
  %848 = vmatpush1.msra.mxu0 %v208
  %849 = vmatprep.subr.mxu0 %v211
  %850 = vmatpush1.msra.mxu0 %v210
  %851 = vmatprep.subr.mxu0 %v213
  %852 = vmatpush1.msra.mxu0 %v212
  %853 = vmatprep.subr.mxu0 %v215
  %854 = vmatpush1.msra.mxu0 %v214
  %855 = vmatprep.subr.mxu0 %v217
  %856 = vmatpush1.msra.mxu0 %v216
  %857 = vmatprep.subr.mxu0 0.0
  %858 = vmatpush1.msra.mxu0 0.0
  %859 = vmatprep.subr.mxu0 0.0
  %860 = vmatpush1.msra.mxu0 0.0
  %861 = vmatprep.subr.mxu0 0.0
  %862 = vmatpush1.msra.mxu0 0.0
  %863 = vmatprep.subr.mxu0 0.0
  %864 = vmatpush1.msra.mxu0 0.0
  %865 = vmatprep.subr.mxu0 0.0
  %866 = vmatpush1.msra.mxu0 0.0
  %867 = vmatprep.subr.mxu0 0.0
  %868 = vmatpush1.msra.mxu0 0.0
  %869 = vmatprep.subr.mxu0 0.0
  %870 = vmatpush1.msra.mxu0 0.0
  %871 = vmatprep.subr.mxu0 0.0
  %872 = vmatpush1.msra.mxu0 0.0
  %873 = vmatprep.subr.mxu0 0.0
  %874 = vmatpush1.msra.mxu0 0.0
  %875 = vmatprep.subr.mxu0 0.0
  %876 = vmatpush1.msra.mxu0 0.0
  %877 = vmatprep.subr.mxu0 0.0
  %878 = vmatpush1.msra.mxu0 0.0
  %879 = vmatprep.subr.mxu0 0.0
  %880 = vmatpush1.msra.mxu0 0.0
  %881 = vmatprep.subr.mxu0 0.0
  %882 = vmatpush1.msra.mxu0 0.0
  %883 = vmatprep.subr.mxu0 0.0
  %884 = vmatpush1.msra.mxu0 0.0
  %885 = vmatprep.subr.mxu0 0.0
  %886 = vmatpush1.msra.mxu0 0.0
  %887 = vmatprep.subr.mxu0 0.0
  %888 = vmatpush1.msra.mxu0 0.0
  %889 = vmatprep.subr.mxu0 0.0
  %890 = vmatpush1.msra.mxu0 0.0
  %891 = vmatprep.subr.mxu0 0.0
  %892 = vmatpush1.msra.mxu0 0.0
  %893 = vmatprep.subr.mxu0 0.0
  %894 = vmatpush1.msra.mxu0 0.0
  %895 = vmatprep.subr.mxu0 0.0
  %896 = vmatpush1.msra.mxu0 0.0
  %897 = vmatprep.subr.mxu0 0.0
  %898 = vmatpush1.msra.mxu0 0.0
  %899 = vmatprep.subr.mxu0 0.0
  %900 = vmatpush1.msra.mxu0 0.0
  %901 = vmatprep.subr.mxu0 0.0
  %902 = vmatpush1.msra.mxu0 0.0
  %903 = vmatprep.subr.mxu0 0.0
  %904 = vmatpush1.msra.mxu0 0.0
  %905 = vmatprep.mubr.f32.mxu0 0.0
  %906 = vmatmul.mubr.f32.gmra.mrb[0].mxu0 %v839
  %v907 = vpop.f32.mrb[0].mxu0
  %v908 = vadd.f32 %v192, %v907
  %v909 = vpop.f32.mrb[0].mxu0
  %v910 = vadd.f32 %v194, %v909
  %911 = vdwg.mxu0
  %v912 = vxor.u32 %v908, 2147483648
  %v913 = vmul.f32 %v912, 1.442695
  %v914 = vpow.pop %v913
  %v915 = vadd.f32 %v914, 1.0
  %v916 = vrcp.pop %v915
  %v917 = vmul.f32 1.0, %v916
  %919 = vrot.lane.b32.xlu0 %v910, 64
  %v920 = vpop.permute.xlu0 %919
  %v922 = vmul.f32 %v917, %v920
  %v923 = vadd.f32 %v910, %v922
  %v924 = vtanh.pop %v923
  %v925 = vsub.f32 %v837, %v924
  %927 = vrot.lane.b32.xlu0 %v925, 64
  %v928 = vpop.permute.xlu0 %927
  %v930 = vmul.f32 %v917, %v928
  %932 = vrot.lane.b32.xlu0 %v930, 64
  %v933 = vpop.permute.xlu0 %932
  %v935 = vadd.f32 %v924, %v933
  %v937 = vsel %vm250, %v935, 0
  %939 = vmatprep.subr.mxu0 %v203
  %940 = vmatpush1.msra.mxu0 %v202
  %941 = vmatprep.subr.mxu0 %v205
  %942 = vmatpush1.msra.mxu0 %v204
  %943 = vmatprep.subr.mxu0 %v207
  %944 = vmatpush1.msra.mxu0 %v206
  %945 = vmatprep.subr.mxu0 %v209
  %946 = vmatpush1.msra.mxu0 %v208
  %947 = vmatprep.subr.mxu0 %v211
  %948 = vmatpush1.msra.mxu0 %v210
  %949 = vmatprep.subr.mxu0 %v213
  %950 = vmatpush1.msra.mxu0 %v212
  %951 = vmatprep.subr.mxu0 %v215
  %952 = vmatpush1.msra.mxu0 %v214
  %953 = vmatprep.subr.mxu0 %v217
  %954 = vmatpush1.msra.mxu0 %v216
  %955 = vmatprep.subr.mxu0 0.0
  %956 = vmatpush1.msra.mxu0 0.0
  %957 = vmatprep.subr.mxu0 0.0
  %958 = vmatpush1.msra.mxu0 0.0
  %959 = vmatprep.subr.mxu0 0.0
  %960 = vmatpush1.msra.mxu0 0.0
  %961 = vmatprep.subr.mxu0 0.0
  %962 = vmatpush1.msra.mxu0 0.0
  %963 = vmatprep.subr.mxu0 0.0
  %964 = vmatpush1.msra.mxu0 0.0
  %965 = vmatprep.subr.mxu0 0.0
  %966 = vmatpush1.msra.mxu0 0.0
  %967 = vmatprep.subr.mxu0 0.0
  %968 = vmatpush1.msra.mxu0 0.0
  %969 = vmatprep.subr.mxu0 0.0
  %970 = vmatpush1.msra.mxu0 0.0
  %971 = vmatprep.subr.mxu0 0.0
  %972 = vmatpush1.msra.mxu0 0.0
  %973 = vmatprep.subr.mxu0 0.0
  %974 = vmatpush1.msra.mxu0 0.0
  %975 = vmatprep.subr.mxu0 0.0
  %976 = vmatpush1.msra.mxu0 0.0
  %977 = vmatprep.subr.mxu0 0.0
  %978 = vmatpush1.msra.mxu0 0.0
  %979 = vmatprep.subr.mxu0 0.0
  %980 = vmatpush1.msra.mxu0 0.0
  %981 = vmatprep.subr.mxu0 0.0
  %982 = vmatpush1.msra.mxu0 0.0
  %983 = vmatprep.subr.mxu0 0.0
  %984 = vmatpush1.msra.mxu0 0.0
  %985 = vmatprep.subr.mxu0 0.0
  %986 = vmatpush1.msra.mxu0 0.0
  %987 = vmatprep.subr.mxu0 0.0
  %988 = vmatpush1.msra.mxu0 0.0
  %989 = vmatprep.subr.mxu0 0.0
  %990 = vmatpush1.msra.mxu0 0.0
  %991 = vmatprep.subr.mxu0 0.0
  %992 = vmatpush1.msra.mxu0 0.0
  %993 = vmatprep.subr.mxu0 0.0
  %994 = vmatpush1.msra.mxu0 0.0
  %995 = vmatprep.subr.mxu0 0.0
  %996 = vmatpush1.msra.mxu0 0.0
  %997 = vmatprep.subr.mxu0 0.0
  %998 = vmatpush1.msra.mxu0 0.0
  %999 = vmatprep.subr.mxu0 0.0
  %1000 = vmatpush1.msra.mxu0 0.0
  %1001 = vmatprep.subr.mxu0 0.0
  %1002 = vmatpush1.msra.mxu0 0.0
  %1003 = vmatprep.mubr.f32.mxu0 0.0
  %1004 = vmatmul.mubr.f32.gmra.mrb[0].mxu0 %v937
  %v1005 = vpop.f32.mrb[0].mxu0
  %v1006 = vadd.f32 %v198, %v1005
  %v1007 = vpop.f32.mrb[0].mxu0
  %v1008 = vadd.f32 %v200, %v1007
  %1009 = vdwg.mxu0
  %v1010 = vxor.u32 %v1006, 2147483648
  %v1011 = vmul.f32 %v1010, 1.442695
  %v1012 = vpow.pop %v1011
  %v1013 = vadd.f32 %v1012, 1.0
  %v1014 = vrcp.pop %v1013
  %v1015 = vmul.f32 1.0, %v1014
  %1017 = vrot.lane.b32.xlu0 %v1008, 64
  %v1018 = vpop.permute.xlu0 %1017
  %v1020 = vmul.f32 %v1015, %v1018
  %v1021 = vadd.f32 %v1008, %v1020
  %v1022 = vtanh.pop %v1021
  %v1023 = vsub.f32 %v935, %v1022
  %1025 = vrot.lane.b32.xlu0 %v1023, 64
  %v1026 = vpop.permute.xlu0 %1025
  %v1028 = vmul.f32 %v1015, %v1026
  %1030 = vrot.lane.b32.xlu0 %v1028, 64
  %v1031 = vpop.permute.xlu0 %1030
  %v1033 = vadd.f32 %v1022, %v1031
  %v1034 = vld [vmem:[%s4] sm:$0xff]
  %v1035 = vld [vmem:[%s4 + $0x8] sm:$0xff]
  %v1036 = vld [vmem:[%s4 + $0x10] sm:$0xff]
  %v1037 = vld [vmem:[%s4 + $0x18] sm:$0xff]
  %v1038 = vld [vmem:[%s4 + $0x20] sm:$0xff]
  %v1039 = vld [vmem:[%s4 + $0x28] sm:$0xff]
  %v1040 = vld [vmem:[%s4 + $0x30] sm:$0xff]
  %v1041 = vld [vmem:[%s4 + $0x38] sm:$0xff]
  %v1042 = vld [vmem:[#allocation2] sm:$0x1]
  %v1044 = vlaneseq
  %v1045 = vshrl.u32 %v1044, 7
  %v1046 = vsub.s32 0, %v1045
  %v1047 = vrot.slane %v1042, %v1046
  %v1050 = vsel %vm250, %v1033, 0
  %1052 = vmatprep.subr.mxu0 0.0
  %1053 = vmatpush1.msra.mxu0 %v1034
  %1054 = vmatprep.subr.mxu0 0.0
  %1055 = vmatpush1.msra.mxu0 %v1035
  %1056 = vmatprep.subr.mxu0 0.0
  %1057 = vmatpush1.msra.mxu0 %v1036
  %1058 = vmatprep.subr.mxu0 0.0
  %1059 = vmatpush1.msra.mxu0 %v1037
  %1060 = vmatprep.subr.mxu0 0.0
  %1061 = vmatpush1.msra.mxu0 %v1038
  %1062 = vmatprep.subr.mxu0 0.0
  %1063 = vmatpush1.msra.mxu0 %v1039
  %1064 = vmatprep.subr.mxu0 0.0
  %1065 = vmatpush1.msra.mxu0 %v1040
  %1066 = vmatprep.subr.mxu0 0.0
  %1067 = vmatpush1.msra.mxu0 %v1041
  %1068 = vmatprep.subr.mxu0 0.0
  %1069 = vmatpush1.msra.mxu0 0.0
  %1070 = vmatprep.subr.mxu0 0.0
  %1071 = vmatpush1.msra.mxu0 0.0
  %1072 = vmatprep.subr.mxu0 0.0
  %1073 = vmatpush1.msra.mxu0 0.0
  %1074 = vmatprep.subr.mxu0 0.0
  %1075 = vmatpush1.msra.mxu0 0.0
  %1076 = vmatprep.subr.mxu0 0.0
  %1077 = vmatpush1.msra.mxu0 0.0
  %1078 = vmatprep.subr.mxu0 0.0
  %1079 = vmatpush1.msra.mxu0 0.0
  %1080 = vmatprep.subr.mxu0 0.0
  %1081 = vmatpush1.msra.mxu0 0.0
  %1082 = vmatprep.subr.mxu0 0.0
  %1083 = vmatpush1.msra.mxu0 0.0
  %1084 = vmatprep.subr.mxu0 0.0
  %1085 = vmatpush1.msra.mxu0 0.0
  %1086 = vmatprep.subr.mxu0 0.0
  %1087 = vmatpush1.msra.mxu0 0.0
  %1088 = vmatprep.subr.mxu0 0.0
  %1089 = vmatpush1.msra.mxu0 0.0
  %1090 = vmatprep.subr.mxu0 0.0
  %1091 = vmatpush1.msra.mxu0 0.0
  %1092 = vmatprep.subr.mxu0 0.0
  %1093 = vmatpush1.msra.mxu0 0.0
  %1094 = vmatprep.subr.mxu0 0.0
  %1095 = vmatpush1.msra.mxu0 0.0
  %1096 = vmatprep.subr.mxu0 0.0
  %1097 = vmatpush1.msra.mxu0 0.0
  %1098 = vmatprep.subr.mxu0 0.0
  %1099 = vmatpush1.msra.mxu0 0.0
  %1100 = vmatprep.subr.mxu0 0.0
  %1101 = vmatpush1.msra.mxu0 0.0
  %1102 = vmatprep.subr.mxu0 0.0
  %1103 = vmatpush1.msra.mxu0 0.0
  %1104 = vmatprep.subr.mxu0 0.0
  %1105 = vmatpush1.msra.mxu0 0.0
  %1106 = vmatprep.subr.mxu0 0.0
  %1107 = vmatpush1.msra.mxu0 0.0
  %1108 = vmatprep.subr.mxu0 0.0
  %1109 = vmatpush1.msra.mxu0 0.0
  %1110 = vmatprep.subr.mxu0 0.0
  %1111 = vmatpush1.msra.mxu0 0.0
  %1112 = vmatprep.subr.mxu0 0.0
  %1113 = vmatpush1.msra.mxu0 0.0
  %1114 = vmatprep.subr.mxu0 0.0
  %1115 = vmatpush1.msra.mxu0 0.0
  %1116 = vmatprep.mubr.f32.mxu0 0.0
  %1117 = vmatmul.mubr.f32.gmra.mrb[0].mxu0 %v1050
  %v1118 = vpop.f32.mrb[0].mxu0
  %v1119 = vadd.f32 %v1047, %v1118
  %v1120 = vpop.f32.mrb[0].mxu0
  %1121 = vdwg.mxu0
  %vm1122 = vcmask 7168
  %1123 = vst.msk [vmem:[%s6] sm:$0xff] %vm1122, %v1119
  // Predicated region
  $region26: #{tpu_custom_call.1} parent=0 // pred_check
    _
  $region27: #{tpu_custom_call.1} parent=0 // pred_check_branch
    %1125 = sbr.rel (0) target = $region29
  $region28: #{tpu_custom_call.1} parent=0 // pred_region
    _
  $region29: #{tpu_custom_call.1} parent=0 // pred_fallthru
    _
  // Predicated region
  $region30: #{tpu_custom_call.1} parent=0 // pred_check
    _
  $region31: #{tpu_custom_call.1} parent=0 // pred_check_branch
    %1127 = sbr.rel (0) target = $region33
  $region32: #{tpu_custom_call.1} parent=0 // pred_region
    _
  $region33: #{tpu_custom_call.1} parent=0 // pred_fallthru
    _

</llo_original>
